<compile_context>
chip_gen: v5e
topology: v5e:2x2
jax: 0.10.0
libtpu: 0.0.40
codegen_flags: <defaults>
</compile_context>

<pallas_src>
import jax
import jax.numpy as jnp
from jax import lax
from jax.experimental import pallas as pl
from jax.experimental.pallas import tpu as pltpu


# ------------------------------ small helpers ------------------------------- #

def _round_up(v, mult):
    return ((v + mult - 1) // mult) * mult


def _device_max_tile():
    """v5e (single vector-store slot, no bf16 VPU) stays at 512; others allow 1024."""
    try:
        kind = jax.devices()[0].device_kind.lower()
    except Exception:
        return 512
    if ("v5 lite" in kind) or ("v5e" in kind) or ("v5litepod" in kind):
        return 512
    return 1024


def _choose_tile(n_pad128, max_tile):
    """Pick (tile, n_pad): largest tile whose extra padding stays <= ~25% and which
    has at least two tiles' worth of rows to amortize; else 128."""
    for t in (1024, 512, 256):
        if t > max_tile:
            continue
        padded = _round_up(n_pad128, t)
        if 4 * padded <= 5 * n_pad128 and n_pad128 >= 2 * t:
            return t, padded
    return 128, n_pad128


def _aug_lhs(pts, c):
    """Rows [2c*x, -c*||x||^2, 1]  ->  (N, D+2)."""
    sq = jnp.sum(pts * pts, axis=-1, keepdims=True)
    return jnp.concatenate([2.0 * c * pts, -c * sq, jnp.ones_like(sq)], axis=-1)


def _aug_rhs_t(pts, c):
    """Columns [x; 1; -c*||x||^2]  ->  (D+2, N)."""
    sq = jnp.sum(pts * pts, axis=-1, keepdims=True)
    return jnp.concatenate([pts, jnp.ones_like(sq), -c * sq], axis=-1).T
# lhs_i . rhs_j = 2c x_i.x_j - c||x_i||^2 - c||x_j||^2 = -0.5 * ||x_i - x_j||^2 / ls^2


# ------------------------------ Pallas kernels ------------------------------ #

def _inducing_kernel(os_ref, zlhs_ref, zrhsT_ref, xrhsT_ref, kzz_ref, kzx_ref):
    """Grid over N tiles: K_ZX (M, tile) per step; K_ZZ (M, M) written once."""
    outputscale = os_ref[0]

    @pl.when(pl.program_id(0) == 0)
    def _():
        e = jnp.dot(zlhs_ref[...], zrhsT_ref[...],
                    preferred_element_type=jnp.float32)
        kzz_ref[...] = (outputscale * jnp.exp(jnp.minimum(e, 0.0))
                        ).astype(kzz_ref.dtype)

    e = jnp.dot(zlhs_ref[...], xrhsT_ref[...],
                preferred_element_type=jnp.float32)
    kzx_ref[...] = (outputscale * jnp.exp(jnp.minimum(e, 0.0))
                    ).astype(kzx_ref.dtype)


def _predictive_kernel(os_ref, xlhs_ref, xrhsT_ref, interpT_ref, mid_ref, covar_ref):
    """Covar tile (i, j): K_XX(i,j) + interp_i^T @ ((S - I) @ interp)_j,
    plus 1e-4 jitter on global-diagonal tiles."""
    outputscale = os_ref[0]

    e = jnp.dot(xlhs_ref[...], xrhsT_ref[...],
                preferred_element_type=jnp.float32)              # (TI, TJ)
    kxx = outputscale * jnp.exp(jnp.minimum(e, 0.0))

    quad = jnp.dot(interpT_ref[...], mid_ref[...],
                   preferred_element_type=jnp.float32)           # (TI, TJ)

    out = kxx + quad
    is_diag = pl.program_id(0) == pl.program_id(1)

    @pl.when(is_diag)
    def _():
        row = lax.broadcasted_iota(jnp.int32, out.shape, 0)
        col = lax.broadcasted_iota(jnp.int32, out.shape, 1)
        covar_ref[...] = jnp.where(row == col, out + 1e-4, out).astype(covar_ref.dtype)

    @pl.when(jnp.logical_not(is_diag))
    def _():
        covar_ref[...] = out.astype(covar_ref.dtype)


# ------------------------------ Pallas wrappers ------------------------------ #

def inducing_covariances(os_scalar, z_lhs, z_rhs_t, x_rhs_t, tile):
    m, daug = z_lhs.shape
    n_pad = x_rhs_t.shape[1]
    g = n_pad // tile
    return pl.pallas_call(
        _inducing_kernel,
        out_shape=(jax.ShapeDtypeStruct((m, m), jnp.float32),
                   jax.ShapeDtypeStruct((m, n_pad), jnp.float32)),
        grid=(g,),
        in_specs=[pl.BlockSpec(memory_space=pltpu.MemorySpace.SMEM),
                  pl.BlockSpec((m, daug), lambda i: (0, 0)),
                  pl.BlockSpec((daug, m), lambda i: (0, 0)),
                  pl.BlockSpec((daug, tile), lambda i: (0, i))],
        out_specs=(pl.BlockSpec((m, m), lambda i: (0, 0)),        # revisited -> arbitrary
                   pl.BlockSpec((m, tile), lambda i: (0, i))),
        compiler_params=pltpu.CompilerParams(dimension_semantics=("arbitrary",)),
    )(os_scalar, z_lhs, z_rhs_t, x_rhs_t)


def predictive_covariance(os_scalar, x_lhs, x_rhs_t, interp_t, mid_interp, tile):
    n_pad, daug = x_lhs.shape
    m = interp_t.shape[1]
    g = n_pad // tile

    # Generation-aware VMEM budget: 1024-tiles need ~8 MiB double-buffered output
    # plus ~16 MiB of elementwise temporaries; 48 MiB fits v6e and v7x (64 MiB/TC).
    vmem_limit = (48 if tile >= 1024 else 32) * 1024 * 1024

    flops = int(n_pad * n_pad * (2 * daug + 2 * m + 6))
    transcendentals = int(n_pad * n_pad)
    bytes_accessed = int(4 * (n_pad * n_pad                           # covar out
                              + 2 * g * n_pad * (daug + m)            # tiled re-reads
                              + 2 * n_pad * (daug + m)))

    return pl.pallas_call(
        _predictive_kernel,
        out_shape=jax.ShapeDtypeStruct((n_pad, n_pad), jnp.float32),
        grid=(g, g),
        in_specs=[pl.BlockSpec(memory_space=pltpu.MemorySpace.SMEM),
                  pl.BlockSpec((tile, daug), lambda i, j: (i, 0)),    # x aug rows,   tile i
                  pl.BlockSpec((daug, tile), lambda i, j: (0, j)),    # x aug cols,   tile j
                  pl.BlockSpec((tile, m), lambda i, j: (i, 0)),       # interp^T rows tile i
                  pl.BlockSpec((m, tile), lambda i, j: (0, j))],      # (S-I)@interp  tile j
        out_specs=pl.BlockSpec((tile, tile), lambda i, j: (i, j)),
        compiler_params=pltpu.CompilerParams(
            dimension_semantics=("parallel", "parallel"),
            vmem_limit_bytes=vmem_limit),
        cost_estimate=pl.CostEstimate(flops=flops,
                                      transcendentals=transcendentals,
                                      bytes_accessed=bytes_accessed),
    )(os_scalar, x_lhs, x_rhs_t, interp_t, mid_interp)


# ------------------------------ GP forward pass ------------------------------ #

def gp_module_1d_forward(x, inducing_points, var_mean, var_chol,
                         lengthscale, outputscale, const_mean):
    """Mirrors GP_Module_1D.forward: returns (predictive_mean, predictive_covar)."""
    n, d = x.shape
    m_ips = inducing_points.shape[0]

    max_tile = _device_max_tile()
    base = _round_up(max(n, 128), 128)
    tile, n_pad = _choose_tile(base, max_tile)

    x32 = x.astype(jnp.float32)
    z32 = inducing_points.astype(jnp.float32)
    x_pad = jnp.pad(x32, ((0, n_pad - n), (0, 0)))

    # exponent = -0.5 * ||a - b||^2 / ls^2  via one augmented matmul; c folded here.
    c = jnp.float32(0.5 / (lengthscale * lengthscale))
    z_lhs = _aug_lhs(z32, c)          # (M, D+2)
    z_rhs_t = _aug_rhs_t(z32, c)      # (D+2, M)
    x_lhs = _aug_lhs(x_pad, c)        # (N_pad, D+2)
    x_rhs_t = _aug_rhs_t(x_pad, c)    # (D+2, N_pad)

    os_scalar = jnp.asarray([outputscale], dtype=jnp.float32)

    # K_ZZ and (padded) K_ZX in one tiled launch.
    kzz, kzx = inducing_covariances(os_scalar, z_lhs, z_rhs_t, x_rhs_t, tile)

    # add_jitter (gpytorch default 1e-3) + Cholesky + triangular solve: MxM glue.
    # TODO(synk): Cholesky / triangular solve kept in plain JAX (no clean Pallas TPU
    #             equivalent); PyTorch reference does them in float64, here float32.
    kzz = kzz + 1e-3 * jnp.eye(m_ips, dtype=jnp.float32)
    l_mat = jnp.linalg.cholesky(kzz)
    interp = jax.scipy.linalg.solve_triangular(l_mat, kzx, lower=True)   # (M, N_pad)

    # Hoisted out of the kernel: predictive mean and (S - I) @ interp.
    mean_pad = var_mean.astype(jnp.float32) @ interp + jnp.float32(const_mean)
    s_minus_i = (var_chol @ var_chol.T
                 - jnp.eye(m_ips, dtype=jnp.float32)).astype(jnp.float32)
    mid_interp = s_minus_i @ interp                                      # (M, N_pad)
    interp_t = interp.T                                                  # (N_pad, M)

    covar_pad = predictive_covariance(os_scalar, x_lhs, x_rhs_t,
                                      interp_t, mid_interp, tile)

    # 1e-4 jitter already added in-kernel; slice is a no-op when n == n_pad.
    mean = mean_pad[:n]
    covar = covar_pad[:n, :n]
    return mean, covar


# ----------------------- pure-JAX reference (for checks) --------------------- #

def _reference_forward(x, z, var_mean, var_chol, lengthscale, outputscale, const_mean):
    def rbf(a, b):
        sq = (jnp.sum(a * a, -1)[:, None] + jnp.sum(b * b, -1)[None, :]
              - 2.0 * jnp.dot(a, b.T, precision=lax.Precision.HIGHEST))
        sq = jnp.maximum(sq, 0.0)
        return outputscale * jnp.exp(-0.5 * sq / (lengthscale * lengthscale))

    m_ips = z.shape[0]
    kzz = rbf(z, z) + 1e-3 * jnp.eye(m_ips, dtype=jnp.float32)
    l_mat = jnp.linalg.cholesky(kzz)
    kzx = rbf(z, x)
    interp = jax.scipy.linalg.solve_triangular(l_mat, kzx, lower=True)
    kxx = rbf(x, x)
    s_cov = var_chol @ var_chol.T
    mean = interp.T @ var_mean + const_mean
    covar = (kxx + 1e-4 * jnp.eye(x.shape[0], dtype=jnp.float32)
             + interp.T @ (s_cov - jnp.eye(m_ips, dtype=jnp.float32)) @ interp)
    return mean, covar


# ----------------------------------- main ------------------------------------ #

if __name__ == "__main__":
    key = jax.random.PRNGKey(0)
    k_x, k_z, k_m, k_c, k_x2 = jax.random.split(key, 5)

    M, D = 16, 8               # inducing points, input dim
    const_mean = 0.1
    lengthscale = 0.6931471805599453   # softplus(0), gpytorch default raw init
    outputscale = 0.6931471805599453

    inducing_points = jax.random.normal(k_z, (M, D), dtype=jnp.float32)
    var_mean = 0.1 * jax.random.normal(k_m, (M,), dtype=jnp.float32)
    var_chol = (jnp.tril(0.05 * jax.random.normal(k_c, (M, M), dtype=jnp.float32))
                + 0.7 * jnp.eye(M, dtype=jnp.float32))

    # --- check 1: small case (N=64 -> padded to 128, single covar tile) -------
    N1 = 64
    x1 = jax.random.normal(k_x, (N1, D), dtype=jnp.float32)
    mean1, covar1 = gp_module_1d_forward(
        x1, inducing_points, var_mean, var_chol, lengthscale, outputscale, const_mean)
    mean1 = jax.block_until_ready(mean1)
    covar1 = jax.block_until_ready(covar1)
    rmean1, rcovar1 = _reference_forward(
        x1, inducing_points, var_mean, var_chol, lengthscale, outputscale, const_mean)
    assert mean1.shape == (N1,) and covar1.shape == (N1, N1)
    assert jnp.allclose(mean1, rmean1, atol=2e-3, rtol=2e-3)
    assert jnp.allclose(covar1, rcovar1, atol=2e-3, rtol=2e-3)

    # --- check 2: non-multiple-of-128 N exercising a 3x3 tiled grid -----------
    # (diagonal-jitter tiles, off-diagonal tiles, and the parallel/parallel grid)
    N2 = 300
    x2 = jax.random.normal(k_x2, (N2, D), dtype=jnp.float32)
    mean2, covar2 = gp_module_1d_forward(
        x2, inducing_points, var_mean, var_chol, lengthscale, outputscale, const_mean)
    mean2 = jax.block_until_ready(mean2)
    covar2 = jax.block_until_ready(covar2)
    rmean2, rcovar2 = _reference_forward(
        x2, inducing_points, var_mean, var_chol, lengthscale, outputscale, const_mean)
    assert mean2.shape == (N2,) and covar2.shape == (N2, N2)
    assert jnp.allclose(mean2, rmean2, atol=2e-3, rtol=2e-3)
    assert jnp.allclose(covar2, rcovar2, atol=2e-3, rtol=2e-3)

    print("KERNEL_OK")
</pallas_src>

<mosaic_0001>
module attributes {stable_mosaic.version = 11 : i64} {
  func.func @_inducing_kernel(%arg0: i32, %arg1: memref<1xf32, #tpu.memory_space<smem>>, %arg2: memref<16x10xf32, #tpu.memory_space<vmem>>, %arg3: memref<10x16xf32, #tpu.memory_space<vmem>>, %arg4: memref<10x128xf32, #tpu.memory_space<vmem>>, %arg5: memref<16x16xf32, #tpu.memory_space<vmem>>, %arg6: memref<16x128xf32, #tpu.memory_space<vmem>>) attributes {dimension_semantics = [#tpu.dimension_semantics<arbitrary>], iteration_bounds = array<i64: 1>, scalar_prefetch = 0 : i64, scratch_operands = 0 : i64, tpu.core_type = #tpu.core_type<tc>, window_params = [{transform_indices = @transform_0, window_bounds = array<i64: 1>}, {pipeline_mode = #tpu.pipeline_mode<synchronous>, transform_indices = @transform_1, window_bounds = array<i64: 16, 10>}, {pipeline_mode = #tpu.pipeline_mode<synchronous>, transform_indices = @transform_2, window_bounds = array<i64: 10, 16>}, {transform_indices = @transform_3, window_bounds = array<i64: 10, 128>}, {pipeline_mode = #tpu.pipeline_mode<synchronous>, transform_indices = @transform_4, window_bounds = array<i64: 16, 16>}, {transform_indices = @transform_5, window_bounds = array<i64: 16, 128>}]} {
    %c0 = arith.constant 0 : index
    %0 = memref.load %arg1[%c0] : memref<1xf32, #tpu.memory_space<smem>>
    %c0_i32 = arith.constant 0 : i32
    %1 = arith.cmpi eq, %arg0, %c0_i32 : i32
    %2 = arith.extui %1 : i1 to i32
    %c0_i32_0 = arith.constant 0 : i32
    %3 = arith.cmpi ne, %2, %c0_i32_0 : i32
    scf.if %3 {
      %c0_8 = arith.constant 0 : index
      %c0_9 = arith.constant 0 : index
      %13 = vector.load %arg2[%c0_8, %c0_9] : memref<16x10xf32, #tpu.memory_space<vmem>>, vector<16x10xf32>
      %c0_10 = arith.constant 0 : index
      %c0_11 = arith.constant 0 : index
      %14 = vector.load %arg3[%c0_10, %c0_11] : memref<10x16xf32, #tpu.memory_space<vmem>>, vector<10x16xf32>
      %cst_12 = arith.constant dense<0.000000e+00> : vector<16x16xf32>
      %15 = tpu.matmul %13, %14, %cst_12 {dimension_numbers = #tpu.dot_dimension_numbers<[1], [0], [0], [1], [0, 0, 1, 1], [], []>} : vector<16x10xf32>, vector<10x16xf32>, vector<16x16xf32> -> vector<16x16xf32>
      %cst_13 = arith.constant 0.000000e+00 : f32
      %16 = vector.broadcast %cst_13 : f32 to vector<16x16xf32>
      %17 = arith.minimumf %15, %16 : vector<16x16xf32>
      %18 = math.exp %17 : vector<16x16xf32>
      %19 = vector.broadcast %0 : f32 to vector<16x16xf32>
      %20 = arith.mulf %19, %18 : vector<16x16xf32>
      %c0_14 = arith.constant 0 : index
      %c0_15 = arith.constant 0 : index
      %21 = vector.load %arg5[%c0_14, %c0_15] : memref<16x16xf32, #tpu.memory_space<vmem>>, vector<16x16xf32>
      tpu.vector_store %arg5[%c0_14, %c0_15], %20 {strides = array<i32>} : memref<16x16xf32, #tpu.memory_space<vmem>>, vector<16x16xf32>,
    } else {
    }
    %c0_1 = arith.constant 0 : index
    %c0_2 = arith.constant 0 : index
    %4 = vector.load %arg2[%c0_1, %c0_2] : memref<16x10xf32, #tpu.memory_space<vmem>>, vector<16x10xf32>
    %c0_3 = arith.constant 0 : index
    %c0_4 = arith.constant 0 : index
    %5 = vector.load %arg4[%c0_3, %c0_4] : memref<10x128xf32, #tpu.memory_space<vmem>>, vector<10x128xf32>
    %cst = arith.constant dense<0.000000e+00> : vector<16x128xf32>
    %6 = tpu.matmul %4, %5, %cst {dimension_numbers = #tpu.dot_dimension_numbers<[1], [0], [0], [1], [0, 0, 1, 1], [], []>} : vector<16x10xf32>, vector<10x128xf32>, vector<16x128xf32> -> vector<16x128xf32>
    %cst_5 = arith.constant 0.000000e+00 : f32
    %7 = vector.broadcast %cst_5 : f32 to vector<16x128xf32>
    %8 = arith.minimumf %6, %7 : vector<16x128xf32>
    %9 = math.exp %8 : vector<16x128xf32>
    %10 = vector.broadcast %0 : f32 to vector<16x128xf32>
    %11 = arith.mulf %10, %9 : vector<16x128xf32>
    %c0_6 = arith.constant 0 : index
    %c0_7 = arith.constant 0 : index
    %12 = vector.load %arg6[%c0_6, %c0_7] : memref<16x128xf32, #tpu.memory_space<vmem>>, vector<16x128xf32>
    tpu.vector_store %arg6[%c0_6, %c0_7], %11 {strides = array<i32>} : memref<16x128xf32, #tpu.memory_space<vmem>>, vector<16x128xf32>,
    return
  }
  func.func @transform_0(%arg0: i32) -> i32 {
    %c0_i32 = arith.constant 0 : i32
    %c0_i32_0 = arith.constant 0 : i32
    return %c0_i32 : i32
  }
  func.func @transform_1(%arg0: i32) -> (i32, i32) {
    %c0_i32 = arith.constant 0 : i32
    %c0_i32_0 = arith.constant 0 : i32
    %c0_i32_1 = arith.constant 0 : i32
    return %c0_i32, %c0_i32_0 : i32, i32
  }
  func.func @transform_2(%arg0: i32) -> (i32, i32) {
    %c0_i32 = arith.constant 0 : i32
    %c0_i32_0 = arith.constant 0 : i32
    %c0_i32_1 = arith.constant 0 : i32
    return %c0_i32, %c0_i32_0 : i32, i32
  }
  func.func @transform_3(%arg0: i32) -> (i32, i32) {
    %c0_i32 = arith.constant 0 : i32
    %c0_i32_0 = arith.constant 0 : i32
    return %c0_i32, %arg0 : i32, i32
  }
  func.func @transform_4(%arg0: i32) -> (i32, i32) {
    %c0_i32 = arith.constant 0 : i32
    %c0_i32_0 = arith.constant 0 : i32
    %c0_i32_1 = arith.constant 0 : i32
    return %c0_i32, %c0_i32_0 : i32, i32
  }
  func.func @transform_5(%arg0: i32) -> (i32, i32) {
    %c0_i32 = arith.constant 0 : i32
    %c0_i32_0 = arith.constant 0 : i32
    return %c0_i32, %arg0 : i32, i32
  }
}

</mosaic_0001>

<llo_original>
// kernel: tpu_custom_call.1
$region0: #{tpu_custom_call.1}
  #allocation0 [shape = 'u32[]', space=smem, size = 0x4, offset = 0x4, fixed_abs, tag = 'smem constant byte address 0x4 - core index']
  #allocation1 [shape = 'u32[72,128]{1,0:T(1,128)}', space=vmem, size = 0x9000, scoped, tag = 'internal scratch']
  #allocation2 [shape = 'f32[1]{0:T(128)S(6)}', space=smem, size = 0x200, scoped, tag = 'scoped memory for tpu_custom_call.1']
  %s0 = inlined_call_operand.<no memory space> [shape: f32[1], index: 0, kind: input, shape index: {}]
  %s1 = inlined_call_operand.hbm [shape: f32[16,10], index: 1, kind: input, shape index: {}]
  %s2 = inlined_call_operand.hbm [shape: f32[10,16], index: 2, kind: input, shape index: {}]
  %s3 = inlined_call_operand.hbm [shape: f32[10,128], index: 3, kind: input, shape index: {}]
  %s4 = inlined_call_operand.hbm [shape: f32[16,16], index: 4, kind: output, shape index: {0}]
  %s5 = inlined_call_operand.hbm [shape: f32[16,128], index: 5, kind: output, shape index: {1}]
  %6 = xla_tuple %s4, %s5
  %s7 = sld [smem:[#allocation0]]
  $region50: #{tpu_custom_call.1} parent=0
    _
  %s9 = ssub.s32 1, %s7
  %s10 = scalar_select 0, %s9, %s7
  %11 = sst [smem:[#allocation2]] %s0
  $region1: #{tpu_custom_call.1} parent=0
    #allocation3 [shape = 'u8[8192]{0}', space=vmem, size = 0x2000, scoped, tag = 'input window, operand 1, single buffered']
    #allocation4 [shape = 's32[1]{0}', space=sflag, size = 0x4, scoped, tag = 'scoped memory for tpu_custom_call.1']
    #allocation5 [shape = 's32[1]{0}', space=sflag, size = 0x4, scoped, tag = 'scoped memory for tpu_custom_call.1']
    #allocation6 [shape = 'u8[8192]{0}', space=vmem, size = 0x2000, scoped, tag = 'input window, operand 2, single buffered']
    #allocation7 [shape = 's32[1]{0}', space=sflag, size = 0x4, scoped, tag = 'scoped memory for tpu_custom_call.1']
    #allocation8 [shape = 'u8[8192]{0}', space=vmem, size = 0x2000, scoped, tag = 'input window, operand 3, single buffered']
    #allocation9 [shape = 'u8[8192]{0}', space=vmem, size = 0x2000, scoped, tag = 'output window, operand 0, single buffered']
    #allocation10 [shape = 'u8[8192]{0}', space=vmem, size = 0x2000, scoped, tag = 'output window, operand 1, single buffered']
    #allocation11 [shape = 's32[1]{0}', space=sflag, size = 0x4, scoped, tag = 'scoped memory for tpu_custom_call.1']
    %12 = vsyncpa [#allocation4], 0
    %13 = vsyncpa [#allocation7], 0
    %14 = vsyncpa [#allocation5], 0
    %15 = vsyncpa [#allocation11], 0
    // Predicated region
    $region2: #{tpu_custom_call.1} parent=1 // pred_check
      _
    $region3: #{tpu_custom_call.1} parent=1 // pred_check_branch
      %17 = sbr.rel (0) target = $region5
    $region4: #{tpu_custom_call.1} parent=1 // pred_region
      _
    $region5: #{tpu_custom_call.1} parent=1 // pred_fallthru
      _
    // Predicated region
    $region6: #{tpu_custom_call.1} parent=1 // pred_check
      _
    $region7: #{tpu_custom_call.1} parent=1 // pred_check_branch
      %19 = sbr.rel (0) target = $region9
    $region8: #{tpu_custom_call.1} parent=1 // pred_region
      %21 = vsyncadd [#allocation4], 0
      %s22 = sshll.u32 %s1, 4
      %s23 = int_to_ptr.hbm [resolvable:$true] %s22
      %s24 = sshll.u32 [#allocation3], 4
      %s25 = int_to_ptr.vmem [resolvable:$true] %s24
      %30 = dma.hbm_to_vmem [thread:$0]  %s23, 256, %s25, [#allocation4], 128, 128, 8
    $region9: #{tpu_custom_call.1} parent=1 // pred_fallthru
      _
    // Predicated region
    $region10: #{tpu_custom_call.1} parent=1 // pred_check
      _
    $region11: #{tpu_custom_call.1} parent=1 // pred_check_branch
      %32 = sbr.rel (0) target = $region13
    $region12: #{tpu_custom_call.1} parent=1 // pred_region
      %34 = vsyncadd [#allocation7], 0
      %s35 = sshll.u32 %s2, 4
      %s36 = int_to_ptr.hbm [resolvable:$true] %s35
      %s37 = sshll.u32 [#allocation6], 4
      %s38 = int_to_ptr.vmem [resolvable:$true] %s37
      %43 = dma.hbm_to_vmem [thread:$0]  %s36, 256, %s38, [#allocation7], 128, 128, 8
    $region13: #{tpu_custom_call.1} parent=1 // pred_fallthru
      _
    // Predicated region
    $region14: #{tpu_custom_call.1} parent=1 // pred_check
      _
    $region15: #{tpu_custom_call.1} parent=1 // pred_check_branch
      %45 = sbr.rel (0) target = $region17
    $region16: #{tpu_custom_call.1} parent=1 // pred_region
      %47 = vsyncadd [#allocation7], 0
      %s48 = sshll.u32 %s3, 4
      %s49 = int_to_ptr.hbm [resolvable:$true] %s48
      %s50 = sshll.u32 [#allocation8], 4
      %s51 = int_to_ptr.vmem [resolvable:$true] %s50
      %56 = dma.hbm_to_vmem [thread:$0]  %s49, 256, %s51, [#allocation7], 128, 128, 8
    $region17: #{tpu_custom_call.1} parent=1 // pred_fallthru
      _
    // Predicated region
    $region18: #{tpu_custom_call.1} parent=1 // pred_check
      _
    $region19: #{tpu_custom_call.1} parent=1 // pred_check_branch
      %58 = sbr.rel (0) target = $region21
    $region20: #{tpu_custom_call.1} parent=1 // pred_region
      %60 = dma.done [#allocation4], 256
    $region21: #{tpu_custom_call.1} parent=1 // pred_fallthru
      _
    // Predicated region
    $region22: #{tpu_custom_call.1} parent=1 // pred_check
      _
    $region23: #{tpu_custom_call.1} parent=1 // pred_check_branch
      %62 = sbr.rel (0) target = $region25
    $region24: #{tpu_custom_call.1} parent=1 // pred_region
      %64 = dma.done [#allocation7], 256
    $region25: #{tpu_custom_call.1} parent=1 // pred_fallthru
      _
    // Predicated region
    $region26: #{tpu_custom_call.1} parent=1 // pred_check
      _
    $region27: #{tpu_custom_call.1} parent=1 // pred_check_branch
      %66 = sbr.rel (0) target = $region29
    $region28: #{tpu_custom_call.1} parent=1 // pred_region
      %68 = dma.done [#allocation7], 256
    $region29: #{tpu_custom_call.1} parent=1 // pred_fallthru
      _
    %s69 = sld [smem:[#allocation2]]
    %p70 = scmp.eq.s32.totalorder 0, 0
    // Predicated region
    $region30: #{tpu_custom_call.1} parent=1 // pred_check
      %p71 = pneg %p70
    $region31: #{tpu_custom_call.1} parent=1 // pred_check_branch
      %73 = sbr.rel (%p71) target = $region33
    $region32: #{tpu_custom_call.1} parent=1 // pred_region
      %v74 = vld [vmem:[#allocation3] sm:$0xff]
      %v75 = vld [vmem:[#allocation3 + $0x8] sm:$0xff]
      %v76 = vld [vmem:[#allocation6] sm:$0xff]
      %v77 = vld [vmem:[#allocation6 + $0x8] sm:$0x3]
      %vm78 = vcmask 80896
      %v80 = vsel %vm78, %v74, 0
      %v83 = vsel %vm78, %v75, 0
      %vm85 = vcmask 1041408
      %v87 = vsel %vm85, %v77, 0
      %89 = vmatpush.msra.mxu0 0.0
      %90 = vmatpush.msra.mxu0 0.0
      %91 = vmatpush.msra.mxu0 0.0
      %92 = vmatpush.msra.mxu0 0.0
      %93 = vmatpush.msra.mxu0 0.0
      %94 = vmatpush.msra.mxu0 0.0
      %95 = vmatpush.msra.mxu0 0.0
      %96 = vmatpush.msra.mxu0 0.0
      %97 = vmatpush.msra.mxu0 0.0
      %98 = vmatpush.msra.mxu0 0.0
      %99 = vmatpush.msra.mxu0 0.0
      %100 = vmatpush.msra.mxu0 0.0
      %101 = vmatpush.msra.mxu0 0.0
      %102 = vmatpush.msra.mxu0 0.0
      %103 = vmatpush.msra.mxu0 %v87
      %104 = vmatpush.msra.mxu0 %v76
      %105 = vmatmul.f32.gmra.mxu0 %v80
      %v106 = vpop.f32.mrf.mxu0
      %v107 = vadd.f32 0.0, %v106
      %108 = vmatmul.f32.gmra.mxu0 %v83
      %v109 = vpop.f32.mrf.mxu0
      %v110 = vadd.f32 0.0, %v109
      %111 = vdwg.mxu0
      %v112 = vmin.f32 %v107, 0.0
      %v113 = vmin.f32 %v110, 0.0
      %v114 = vmul.f32 %v112, 1.442695
      %v115 = vpow.pop %v114
      %v116 = vmul.f32 %v113, 1.442695
      %v117 = vpow.pop %v116
      %v118 = vstv %s69
      %v119 = vmul.f32 %v118, %v115
      %v120 = vmul.f32 %v118, %v117
      %vm121 = vcmask 130048
      %122 = vst.msk [vmem:[#allocation9] sm:$0xff] %vm121, %v119
      %123 = vst.msk [vmem:[#allocation9 + $0x8] sm:$0xff] %vm121, %v120
    $region33: #{tpu_custom_call.1} parent=1 // pred_fallthru
      _
    %v124 = vld [vmem:[#allocation3] sm:$0xff]
    %v125 = vld [vmem:[#allocation3 + $0x8] sm:$0xff]
    %v126 = vld [vmem:[#allocation8] sm:$0xff]
    %v127 = vld [vmem:[#allocation8 + $0x8] sm:$0x3]
    %vm128 = vcmask 80896
    %v130 = vsel %vm128, %v124, 0
    %v133 = vsel %vm128, %v125, 0
    %vm135 = vcmask 1041408
    %v137 = vsel %vm135, %v127, 0
    %139 = vmatpush.msra.mxu0 0.0
    %140 = vmatpush.msra.mxu0 0.0
    %141 = vmatpush.msra.mxu0 0.0
    %142 = vmatpush.msra.mxu0 0.0
    %143 = vmatpush.msra.mxu0 0.0
    %144 = vmatpush.msra.mxu0 0.0
    %145 = vmatpush.msra.mxu0 0.0
    %146 = vmatpush.msra.mxu0 0.0
    %147 = vmatpush.msra.mxu0 0.0
    %148 = vmatpush.msra.mxu0 0.0
    %149 = vmatpush.msra.mxu0 0.0
    %150 = vmatpush.msra.mxu0 0.0
    %151 = vmatpush.msra.mxu0 0.0
    %152 = vmatpush.msra.mxu0 0.0
    %153 = vmatpush.msra.mxu0 %v137
    %154 = vmatpush.msra.mxu0 %v126
    %155 = vmatmul.f32.gmra.mxu0 %v130
    %v156 = vpop.f32.mrf.mxu0
    %v157 = vadd.f32 0.0, %v156
    %158 = vmatmul.f32.gmra.mxu0 %v133
    %v159 = vpop.f32.mrf.mxu0
    %v160 = vadd.f32 0.0, %v159
    %161 = vdwg.mxu0
    %v162 = vmin.f32 %v157, 0.0
    %v163 = vmin.f32 %v160, 0.0
    %v164 = vmul.f32 %v162, 1.442695
    %v165 = vpow.pop %v164
    %v166 = vmul.f32 %v163, 1.442695
    %v167 = vpow.pop %v166
    %v168 = vstv %s69
    %v169 = vmul.f32 %v168, %v165
    %v170 = vmul.f32 %v168, %v167
    %171 = vst [vmem:[#allocation10] sm:$0xff] %v169
    %172 = vst [vmem:[#allocation10 + $0x8] sm:$0xff] %v170
    // Predicated region
    $region34: #{tpu_custom_call.1} parent=1 // pred_check
      _
    $region35: #{tpu_custom_call.1} parent=1 // pred_check_branch
      %174 = sbr.rel (0) target = $region37
    $region36: #{tpu_custom_call.1} parent=1 // pred_region
      %176 = vsyncadd [#allocation5], 0
      %s177 = sshll.u32 [#allocation9], 4
      %s178 = int_to_ptr.vmem [resolvable:$true] %s177
      %s179 = sshll.u32 %s4, 4
      %s180 = int_to_ptr.hbm [resolvable:$true] %s179
      %185 = dma.vmem_to_hbm [thread:$0]  %s178, 256, %s180, [#allocation5], 128, 128, 8
    $region37: #{tpu_custom_call.1} parent=1 // pred_fallthru
      _
    // Predicated region
    $region38: #{tpu_custom_call.1} parent=1 // pred_check
      _
    $region39: #{tpu_custom_call.1} parent=1 // pred_check_branch
      %187 = sbr.rel (0) target = $region41
    $region40: #{tpu_custom_call.1} parent=1 // pred_region
      %189 = vsyncadd [#allocation11], 0
      %s190 = sshll.u32 [#allocation10], 4
      %s191 = int_to_ptr.vmem [resolvable:$true] %s190
      %s192 = sshll.u32 %s5, 4
      %s193 = int_to_ptr.hbm [resolvable:$true] %s192
      %198 = dma.vmem_to_hbm [thread:$0]  %s191, 256, %s193, [#allocation11], 128, 128, 8
    $region41: #{tpu_custom_call.1} parent=1 // pred_fallthru
      _
    // Predicated region
    $region42: #{tpu_custom_call.1} parent=1 // pred_check
      _
    $region43: #{tpu_custom_call.1} parent=1 // pred_check_branch
      %200 = sbr.rel (0) target = $region45
    $region44: #{tpu_custom_call.1} parent=1 // pred_region
      %202 = dma.done [#allocation5], 256
    $region45: #{tpu_custom_call.1} parent=1 // pred_fallthru
      _
    // Predicated region
    $region46: #{tpu_custom_call.1} parent=1 // pred_check
      _
    $region47: #{tpu_custom_call.1} parent=1 // pred_check_branch
      %204 = sbr.rel (0) target = $region49
    $region48: #{tpu_custom_call.1} parent=1 // pred_region
      %206 = dma.done [#allocation11], 256
    $region49: #{tpu_custom_call.1} parent=1 // pred_fallthru
      _
    %207 = vsyncpa [#allocation4], 1
    %208 = vsyncpa [#allocation7], 1
    %209 = vsyncpa [#allocation5], 1
    %210 = vsyncpa [#allocation11], 1

</llo_original>
